<compile_context>
chip_gen: v7x
topology: tpu7x:2x2x1
jax: 0.10.0
libtpu: 0.0.40
codegen_flags: <defaults>
</compile_context>

<pallas_src>
import math
from functools import partial

import jax
import jax.numpy as jnp
from jax.experimental import pallas as pl
from jax.experimental.pallas import tpu as pltpu


def _round_up(x, m):
    return ((x + m - 1) // m) * m


def _decoder_attn_kernel(q_ref, enc_ref, w_ref, out_ref, attn_ref, ctx_ref,
                         *, hidden_true, seq_true):
    """One (batch b, vocab-block j) grid step.

    q_ref    : (T_pad, H_pad)  f32  embedded prev_output_tokens (queries), batch b
    enc_ref  : (S_pad, H_pad)  bf16 encoder output (keys == values), batch b
    w_ref    : (H_pad, tV)     bf16 output-projection column block j
    out_ref  : (T_pad, tV)     f32  decoder logits block (b, j)
    attn_ref : (T_pad, S_pad)  f32  attention weights (written once per b, at j == 0)
    ctx_ref  : (T_pad, H_pad)  bf16 scratch: (context + q), resident across the j axis
    """
    j = pl.program_id(1)

    @pl.when(j == 0)
    def _compute_attention():
        q = q_ref[...]                                           # (T, H) f32
        scale = 1.0 / math.sqrt(hidden_true)
        qs = (q * scale).astype(jnp.bfloat16)                    # fold scale into q (T*H muls)
        enc = enc_ref[...]                                       # (S, H) bf16

        # scores (T, S): contract last dims of both operands -> MXU, no enc.T transpose.
        scores = jax.lax.dot_general(
            qs, enc, dimension_numbers=(((1,), (1,)), ((), ())),
            preferred_element_type=jnp.float32)

        if seq_true != scores.shape[-1]:   # static: mask padded encoder positions
            key_ids = jax.lax.broadcasted_iota(jnp.int32, scores.shape, 1)
            scores = jnp.where(key_ids < seq_true, scores, jnp.float32(-1e30))

        # Numerically stable softmax over S, all statistics in f32.
        m = jnp.max(scores, axis=-1, keepdims=True)
        p = jnp.exp(scores - m)
        denom = jnp.sum(p, axis=-1, keepdims=True)
        attn = p * pl.reciprocal(denom, approx=True)             # EUP slot, near free
        attn_ref[...] = attn.astype(attn_ref.dtype)

        # context (T, H) = attn @ enc — bf16 operands, f32 accumulation.
        ctx = jax.lax.dot_general(
            attn.astype(jnp.bfloat16), enc,
            dimension_numbers=(((1,), (0,)), ((), ())),
            preferred_element_type=jnp.float32)
        ctx_ref[...] = (ctx + q).astype(jnp.bfloat16)            # residual, kept in VMEM

    # Output-projection block: (T, tV) = (context + q) @ w_out[:, j*tV:(j+1)*tV]
    out_ref[...] = jnp.dot(ctx_ref[...], w_ref[...],
                           preferred_element_type=jnp.float32).astype(out_ref.dtype)


def decoder_forward(prev_output_tokens, encoder_out, embed_table, w_out, *, tile_v=128):
    """JAX wrapper: embedding gather (glue), lane-dense padding, Pallas attention kernel.

    Returns (decoder_output, attention_weights) matching DecoderOutputType.
    """
    B, T = prev_output_tokens.shape
    _, S, H = encoder_out.shape
    V = w_out.shape[1]

    T_pad = _round_up(max(T, 8), 8)
    S_pad = _round_up(max(S, 128), 128)
    H_pad = _round_up(max(H, 128), 128)
    V_pad = _round_up(max(V, tile_v), tile_v)
    n_v = V_pad // tile_v

    # Embedding lookup (gather) stays in plain JAX glue.
    q = jnp.take(embed_table, prev_output_tokens, axis=0).astype(jnp.float32)   # (B,T,H)

    q_p = jnp.pad(q, ((0, 0), (0, T_pad - T), (0, H_pad - H)))
    enc_p = jnp.pad(encoder_out.astype(jnp.float32),
                    ((0, 0), (0, S_pad - S), (0, H_pad - H))).astype(jnp.bfloat16)
    w_p = jnp.pad(w_out.astype(jnp.float32),
                  ((0, H_pad - H), (0, V_pad - V))).astype(jnp.bfloat16)

    kernel = partial(_decoder_attn_kernel, hidden_true=H, seq_true=S)

    grid_spec = pltpu.PrefetchScalarGridSpec(
        num_scalar_prefetch=0,
        grid=(B, n_v),                                            # batch parallel, V-blocks inner
        in_specs=[
            pl.BlockSpec((None, T_pad, H_pad), lambda b, j: (b, 0, 0)),   # queries (batch-squeezed)
            pl.BlockSpec((None, S_pad, H_pad), lambda b, j: (b, 0, 0)),   # encoder out (bf16)
            pl.BlockSpec((H_pad, tile_v), lambda b, j: (0, j)),           # w_out column block (bf16)
        ],
        out_specs=[
            pl.BlockSpec((None, T_pad, tile_v), lambda b, j: (b, 0, j)),  # logits block (lane-dense)
            pl.BlockSpec((None, T_pad, S_pad), lambda b, j: (b, 0, 0)),   # attention weights
        ],
        scratch_shapes=[pltpu.VMEM((T_pad, H_pad), jnp.bfloat16)],        # resident (context + q)
    )

    out_p, attn_p = pl.pallas_call(
        kernel,
        out_shape=(
            jax.ShapeDtypeStruct((B, T_pad, V_pad), jnp.float32),
            jax.ShapeDtypeStruct((B, T_pad, S_pad), jnp.float32),
        ),
        grid_spec=grid_spec,
        compiler_params=pltpu.CompilerParams(
            dimension_semantics=("parallel", "arbitrary"),
            vmem_limit_bytes=32 * 1024 * 1024,
        ),
    )(q_p, enc_p, w_p)

    return out_p[:, :T, :V], attn_p[:, :T, :S]


# ------------------------------- main -----------------------------------------
if __name__ == "__main__":
    # Small shapes that still exercise padding, masking and the V-block grid axis.
    B, T, S, H, V = 2, 10, 40, 32, 200

    key = jax.random.PRNGKey(0)
    k_tok, k_enc, k_emb, k_w = jax.random.split(key, 4)

    prev_output_tokens = jax.random.randint(k_tok, (B, T), 0, V, dtype=jnp.int32)
    encoder_out = jax.random.normal(k_enc, (B, S, H), dtype=jnp.float32)

    # Deterministic synthetic "parameters" (the abstract module defines none).
    embed_table = jax.random.normal(k_emb, (V, H), dtype=jnp.float32) * 0.1
    w_out = jax.random.normal(k_w, (H, V), dtype=jnp.float32) * 0.1

    dec_out, attn_w = decoder_forward(prev_output_tokens, encoder_out,
                                      embed_table, w_out)
    jax.block_until_ready((dec_out, attn_w))

    # Pure-f32 JAX reference (kernel uses bf16 MXU operands with f32 accumulation,
    # so tolerances are bf16-level).
    q_ref = jnp.take(embed_table, prev_output_tokens, axis=0)
    scores_ref = jnp.einsum("bth,bsh->bts", q_ref, encoder_out) / math.sqrt(H)
    attn_ref = jax.nn.softmax(scores_ref, axis=-1)
    ctx_ref = jnp.einsum("bts,bsh->bth", attn_ref, encoder_out)
    out_ref = jnp.einsum("bth,hv->btv", ctx_ref + q_ref, w_out)

    assert dec_out.shape == (B, T, V) and attn_w.shape == (B, T, S)
    assert bool(jnp.all(jnp.isfinite(dec_out))) and bool(jnp.all(jnp.isfinite(attn_w)))
    assert jnp.allclose(attn_w, attn_ref, atol=2e-2, rtol=2e-2)
    assert jnp.allclose(dec_out, out_ref, atol=3e-2, rtol=3e-2)

    print("KERNEL_OK")
</pallas_src>

<mosaic_0001>
module attributes {stable_mosaic.version = 11 : i64} {
  func.func @_decoder_attn_kernel(%arg0: i32, %arg1: i32, %arg2: memref<1x16x128xf32, #tpu.memory_space<vmem>>, %arg3: memref<1x128x128xbf16, #tpu.memory_space<vmem>>, %arg4: memref<128x128xbf16, #tpu.memory_space<vmem>>, %arg5: memref<1x16x128xf32, #tpu.memory_space<vmem>>, %arg6: memref<1x16x128xf32, #tpu.memory_space<vmem>>, %arg7: memref<16x128xbf16, #tpu.memory_space<vmem>>) attributes {dimension_semantics = [#tpu.dimension_semantics<parallel>, #tpu.dimension_semantics<arbitrary>], iteration_bounds = array<i64: 2, 2>, scalar_prefetch = 0 : i64, scratch_operands = 1 : i64, tpu.core_type = #tpu.core_type<tc>, window_params = [{transform_indices = @transform_0, window_bounds = array<i64: 1, 16, 128>}, {transform_indices = @transform_1, window_bounds = array<i64: 1, 128, 128>}, {transform_indices = @transform_2, window_bounds = array<i64: 128, 128>}, {transform_indices = @transform_3, window_bounds = array<i64: 1, 16, 128>}, {transform_indices = @transform_4, window_bounds = array<i64: 1, 16, 128>}]} {
    %c0_i32 = arith.constant 0 : i32
    %0 = arith.cmpi eq, %arg1, %c0_i32 : i32
    %1 = arith.extui %0 : i1 to i32
    %c0_i32_0 = arith.constant 0 : i32
    %2 = arith.cmpi ne, %1, %c0_i32_0 : i32
    scf.if %2 {
      %c0_7 = arith.constant 0 : index
      %c0_8 = arith.constant 0 : index
      %c0_9 = arith.constant 0 : index
      %9 = vector.load %arg2[%c0_7, %c0_8, %c0_9] : memref<1x16x128xf32, #tpu.memory_space<vmem>>, vector<1x16x128xf32>
      %10 = vector.shape_cast %9 : vector<1x16x128xf32> to vector<16x128xf32>
      %cst_10 = arith.constant 0.176776692 : f32
      %11 = vector.broadcast %cst_10 : f32 to vector<16x128xf32>
      %12 = arith.mulf %10, %11 : vector<16x128xf32>
      %13 = arith.truncf %12 : vector<16x128xf32> to vector<16x128xbf16>
      %c0_11 = arith.constant 0 : index
      %c0_12 = arith.constant 0 : index
      %c0_13 = arith.constant 0 : index
      %14 = vector.load %arg3[%c0_11, %c0_12, %c0_13] : memref<1x128x128xbf16, #tpu.memory_space<vmem>>, vector<1x128x128xbf16>
      %15 = vector.shape_cast %14 : vector<1x128x128xbf16> to vector<128x128xbf16>
      %cst_14 = arith.constant dense<0.000000e+00> : vector<16x128xf32>
      %16 = tpu.matmul %13, %15, %cst_14 {dimension_numbers = #tpu.dot_dimension_numbers<[1], [1], [0], [0], [0, 0, 1, 0], [], []>} : vector<16x128xbf16>, vector<128x128xbf16>, vector<16x128xf32> -> vector<16x128xf32>
      %17 = tpu.iota {dimensions = array<i32: 1>} : vector<16x128xi32>
      %c40_i32 = arith.constant 40 : i32
      %18 = vector.broadcast %c40_i32 : i32 to vector<16x128xi32>
      %19 = arith.cmpi slt, %17, %18 : vector<16x128xi32>
      %cst_15 = arith.constant -1.000000e+30 : f32
      %20 = vector.broadcast %cst_15 : f32 to vector<16x128xf32>
      %21 = arith.select %19, %16, %20 : vector<16x128xi1>, vector<16x128xf32>
      %cst_16 = arith.constant dense<0xFF800000> : vector<16xf32>
      %22 = vector.multi_reduction <maximumf>, %21, %cst_16 [1] : vector<16x128xf32> to vector<16xf32>
      %23 = vector.shape_cast %22 : vector<16xf32> to vector<16x1xf32>
      %24 = vector.broadcast %23 : vector<16x1xf32> to vector<16x128xf32>
      %25 = arith.subf %21, %24 : vector<16x128xf32>
      %26 = math.exp %25 : vector<16x128xf32>
      %cst_17 = arith.constant dense<0.000000e+00> : vector<16xf32>
      %27 = vector.multi_reduction <add>, %26, %cst_17 [1] : vector<16x128xf32> to vector<16xf32>
      %28 = vector.shape_cast %27 : vector<16xf32> to vector<16x1xf32>
      %29 = tpu.reciprocal %28 {approx = true} : vector<16x1xf32> -> vector<16x1xf32>
      %30 = vector.broadcast %29 : vector<16x1xf32> to vector<16x128xf32>
      %31 = arith.mulf %26, %30 : vector<16x128xf32>
      %c0_18 = arith.constant 0 : index
      %c0_19 = arith.constant 0 : index
      %c0_20 = arith.constant 0 : index
      %32 = vector.load %arg6[%c0_18, %c0_19, %c0_20] : memref<1x16x128xf32, #tpu.memory_space<vmem>>, vector<1x16x128xf32>
      %33 = vector.shape_cast %32 : vector<1x16x128xf32> to vector<16x128xf32>
      %34 = vector.shape_cast %31 : vector<16x128xf32> to vector<1x16x128xf32>
      tpu.vector_store %arg6[%c0_18, %c0_19, %c0_20], %34 {strides = array<i32>} : memref<1x16x128xf32, #tpu.memory_space<vmem>>, vector<1x16x128xf32>,
      %35 = arith.truncf %31 : vector<16x128xf32> to vector<16x128xbf16>
      %cst_21 = arith.constant dense<0.000000e+00> : vector<16x128xf32>
      %36 = tpu.matmul %35, %15, %cst_21 {dimension_numbers = #tpu.dot_dimension_numbers<[1], [0], [0], [1], [0, 0, 1, 1], [], []>} : vector<16x128xbf16>, vector<128x128xbf16>, vector<16x128xf32> -> vector<16x128xf32>
      %37 = arith.addf %36, %10 : vector<16x128xf32>
      %38 = arith.truncf %37 : vector<16x128xf32> to vector<16x128xbf16>
      %c0_22 = arith.constant 0 : index
      %c0_23 = arith.constant 0 : index
      %39 = vector.load %arg7[%c0_22, %c0_23] : memref<16x128xbf16, #tpu.memory_space<vmem>>, vector<16x128xbf16>
      tpu.vector_store %arg7[%c0_22, %c0_23], %38 {strides = array<i32>} : memref<16x128xbf16, #tpu.memory_space<vmem>>, vector<16x128xbf16>,
    } else {
    }
    %c0 = arith.constant 0 : index
    %c0_1 = arith.constant 0 : index
    %3 = vector.load %arg7[%c0, %c0_1] : memref<16x128xbf16, #tpu.memory_space<vmem>>, vector<16x128xbf16>
    %c0_2 = arith.constant 0 : index
    %c0_3 = arith.constant 0 : index
    %4 = vector.load %arg4[%c0_2, %c0_3] : memref<128x128xbf16, #tpu.memory_space<vmem>>, vector<128x128xbf16>
    %cst = arith.constant dense<0.000000e+00> : vector<16x128xf32>
    %5 = tpu.matmul %3, %4, %cst {dimension_numbers = #tpu.dot_dimension_numbers<[1], [0], [0], [1], [0, 0, 1, 1], [], []>} : vector<16x128xbf16>, vector<128x128xbf16>, vector<16x128xf32> -> vector<16x128xf32>
    %c0_4 = arith.constant 0 : index
    %c0_5 = arith.constant 0 : index
    %c0_6 = arith.constant 0 : index
    %6 = vector.load %arg5[%c0_4, %c0_5, %c0_6] : memref<1x16x128xf32, #tpu.memory_space<vmem>>, vector<1x16x128xf32>
    %7 = vector.shape_cast %6 : vector<1x16x128xf32> to vector<16x128xf32>
    %8 = vector.shape_cast %5 : vector<16x128xf32> to vector<1x16x128xf32>
    tpu.vector_store %arg5[%c0_4, %c0_5, %c0_6], %8 {strides = array<i32>} : memref<1x16x128xf32, #tpu.memory_space<vmem>>, vector<1x16x128xf32>,
    return
  }
  func.func @transform_0(%arg0: i32, %arg1: i32) -> (i32, i32, i32) {
    %c0_i32 = arith.constant 0 : i32
    %c0_i32_0 = arith.constant 0 : i32
    %c0_i32_1 = arith.constant 0 : i32
    return %arg0, %c0_i32, %c0_i32_0 : i32, i32, i32
  }
  func.func @transform_1(%arg0: i32, %arg1: i32) -> (i32, i32, i32) {
    %c0_i32 = arith.constant 0 : i32
    %c0_i32_0 = arith.constant 0 : i32
    %c0_i32_1 = arith.constant 0 : i32
    return %arg0, %c0_i32, %c0_i32_0 : i32, i32, i32
  }
  func.func @transform_2(%arg0: i32, %arg1: i32) -> (i32, i32) {
    %c0_i32 = arith.constant 0 : i32
    %c0_i32_0 = arith.constant 0 : i32
    return %c0_i32, %arg1 : i32, i32
  }
  func.func @transform_3(%arg0: i32, %arg1: i32) -> (i32, i32, i32) {
    %c0_i32 = arith.constant 0 : i32
    %c0_i32_0 = arith.constant 0 : i32
    return %arg0, %c0_i32, %arg1 : i32, i32, i32
  }
  func.func @transform_4(%arg0: i32, %arg1: i32) -> (i32, i32, i32) {
    %c0_i32 = arith.constant 0 : i32
    %c0_i32_0 = arith.constant 0 : i32
    %c0_i32_1 = arith.constant 0 : i32
    return %arg0, %c0_i32, %c0_i32_0 : i32, i32, i32
  }
}

</mosaic_0001>

<llo_original>
// kernel: tpu_custom_call.1
$region0: #{tpu_custom_call.1}
  #allocation0 [shape = 'u32[]', space=smem, size = 0x4, offset = 0x4, fixed_abs, tag = 'smem constant byte address 0x4 - core index']
  #allocation1 [shape = 'u32[144,128]{1,0:T(1,128)}', space=vmem, size = 0x12000, scoped, tag = 'internal scratch']
  #allocation2 [shape = 'bf16[16,128]{1,0:T(16,128)(2,1)}', space=vmem, size = 0x1000, scoped, tag = 'scratch operand']
  %s0 = inlined_call_operand.hbm [shape: f32[2,16,128], index: 0, kind: input, shape index: {}]
  %s1 = inlined_call_operand.hbm [shape: bf16[2,128,128], index: 1, kind: input, shape index: {}]
  %s2 = inlined_call_operand.hbm [shape: bf16[128,256], index: 2, kind: input, shape index: {}]
  %s3 = inlined_call_operand.hbm [shape: f32[2,16,256], index: 3, kind: output, shape index: {0}]
  %s4 = inlined_call_operand.hbm [shape: f32[2,16,128], index: 4, kind: output, shape index: {1}]
  %5 = xla_tuple %s3, %s4
  %s6 = sld [smem:[#allocation0]]
  $region69: #{tpu_custom_call.1} parent=0
    _
  %s8 = ssub.s32 1, %s6
  %s9 = scalar_select 0, %s8, %s6
  $region1: #{tpu_custom_call.1} parent=0
    #allocation3 [shape = 'u8[16384]{0}', space=vmem, size = 0x4000, scoped, tag = 'input window, operand 0']
    #allocation4 [shape = 's32[2]{0}', space=sflag, size = 0x8, scoped, tag = 'scoped memory for tpu_custom_call.1']
    #allocation5 [shape = 's32[2]{0}', space=sflag, size = 0x8, scoped, tag = 'scoped memory for tpu_custom_call.1']
    #allocation6 [shape = 'u8[65536]{0}', space=vmem, size = 0x10000, scoped, tag = 'input window, operand 1']
    #allocation7 [shape = 's32[2]{0}', space=sflag, size = 0x8, scoped, tag = 'scoped memory for tpu_custom_call.1']
    #allocation8 [shape = 'u8[65536]{0}', space=vmem, size = 0x10000, scoped, tag = 'input window, operand 2']
    #allocation9 [shape = 'u8[16384]{0}', space=vmem, size = 0x4000, scoped, tag = 'output window, operand 0']
    #allocation10 [shape = 'u8[16384]{0}', space=vmem, size = 0x4000, scoped, tag = 'output window, operand 1']
    #allocation11 [shape = 's32[2]{0}', space=sflag, size = 0x8, scoped, tag = 'scoped memory for tpu_custom_call.1']
    %10 = vsyncpa [#allocation4], 0
    %s11 = scalar_lea.sflag [#allocation4], 1
    %12 = vsyncpa %s11, 0
    %13 = vsyncpa [#allocation7], 0
    %s14 = scalar_lea.sflag [#allocation7], 1
    %15 = vsyncpa %s14, 0
    %16 = vsyncpa [#allocation5], 0
    %s17 = scalar_lea.sflag [#allocation5], 1
    %18 = vsyncpa %s17, 0
    %19 = vsyncpa [#allocation11], 0
    %s20 = scalar_lea.sflag [#allocation11], 1
    %21 = vsyncpa %s20, 0
    loop: start=0, step=1, limit=6
    $region2: #{tpu_custom_call.1} parent=1 // loop_pre_header
      _
    $region3: #{tpu_custom_call.1} parent=1 // loop_header
      %s23 = sphi 0, %s27
      %p24 = scmp.ge.s32.totalorder %s23, 6
      %s30 = sphi 0, %s42
      %s31 = sphi 0, %s38
      %s32 = sphi 0, %s30
      %s33 = sphi 0, %s31
      %s34 = sphi 0, %s32
      %s35 = sphi 0, %s33
      %s45 = sphi 0, %s47
      %s48 = sphi 0, %s45
      %s49 = sphi 0, %s48
      %s65 = sphi 0, %s49
      %s71 = sphi 0, %s73
      %s74 = sphi 0, %s71
      %s75 = sphi 0, %s74
      %s91 = sphi 0, %s75
      %s97 = sphi 0, %s99
      %s100 = sphi 0, %s97
      %s101 = sphi 0, %s100
      %s117 = sphi 0, %s101
      %s125 = sphi 0, %s127
      %s128 = sphi 0, %s125
      %s129 = sphi 0, %s128
      %s145 = sphi 0, %s129
      %s151 = sphi 0, %s153
      %s154 = sphi 0, %s151
      %s155 = sphi 0, %s154
      %s171 = sphi 0, %s155
    $region4: #{tpu_custom_call.1} parent=1 // loop_header_branch
      %26 = sbr.rel (%p24) target = $region8
    $region5: #{tpu_custom_call.1} parent=1 // loop_body
      %s28 = ssub.s32 %s23, 1
      %s29 = ssub.s32 %s23, 2
      %s36 = sadd.s32 1, %s31
      %p37 = scmp.ge.s32.totalorder %s36, 2
      %s38 = scalar_select %p37, 0, %s36
      %s39 = sadd.s32 1, %s30
      %s40 = scalar_select %p37, %s39, %s30
      %p41 = scmp.ge.s32.totalorder %s40, 2
      %s42 = scalar_select %p41, 0, %s40
      %s43 = ssub.s32 %s30, %s42
      %p44 = scmp.eq.s32.totalorder %s43, 0
      %s46 = sadd.s32 %s45, 1
      %s47 = scalar_select %p44, %s45, %s46
      %p50 = pneg %p44
      %p51 = scmp.eq.s32.totalorder %s23, 3
      %p52 = por %p50, %p51
      %p53 = scmp.ne.s32.totalorder %s45, %s48
      %p54 = scmp.eq.s32.totalorder %s23, 0
      %p55 = por %p53, %p54
      %p56 = scmp.ne.s32.totalorder %s45, %s48
      %p57 = scmp.eq.s32.totalorder %s28, 3
      %p58 = por %p56, %p57
      %p59 = scmp.ne.s32.totalorder %s48, %s49
      %p60 = scmp.eq.s32.totalorder %s28, 0
      %p61 = por %p59, %p60
      %p62 = scmp.ne.s32.totalorder %s48, %s49
      %p63 = scmp.eq.s32.totalorder %s29, 3
      %p64 = por %p62, %p63
      %p66 = scmp.ne.s32.totalorder %s49, %s65
      %p67 = scmp.eq.s32.totalorder %s29, 0
      %p68 = por %p66, %p67
      %s69 = ssub.s32 %s30, %s42
      %p70 = scmp.eq.s32.totalorder %s69, 0
      %s72 = sadd.s32 %s71, 1
      %s73 = scalar_select %p70, %s71, %s72
      %p76 = pneg %p70
      %p77 = scmp.eq.s32.totalorder %s23, 3
      %p78 = por %p76, %p77
      %p79 = scmp.ne.s32.totalorder %s71, %s74
      %p80 = scmp.eq.s32.totalorder %s23, 0
      %p81 = por %p79, %p80
      %p82 = scmp.ne.s32.totalorder %s71, %s74
      %p83 = scmp.eq.s32.totalorder %s28, 3
      %p84 = por %p82, %p83
      %p85 = scmp.ne.s32.totalorder %s74, %s75
      %p86 = scmp.eq.s32.totalorder %s28, 0
      %p87 = por %p85, %p86
      %p88 = scmp.ne.s32.totalorder %s74, %s75
      %p89 = scmp.eq.s32.totalorder %s29, 3
      %p90 = por %p88, %p89
      %p92 = scmp.ne.s32.totalorder %s75, %s91
      %p93 = scmp.eq.s32.totalorder %s29, 0
      %p94 = por %p92, %p93
      %s95 = ssub.s32 %s31, %s38
      %p96 = scmp.eq.s32.totalorder %s95, 0
      %s98 = sadd.s32 %s97, 1
      %s99 = scalar_select %p96, %s97, %s98
      %p102 = pneg %p96
      %p103 = scmp.eq.s32.totalorder %s23, 3
      %p104 = por %p102, %p103
      %p105 = scmp.ne.s32.totalorder %s97, %s100
      %p106 = scmp.eq.s32.totalorder %s23, 0
      %p107 = por %p105, %p106
      %p108 = scmp.ne.s32.totalorder %s97, %s100
      %p109 = scmp.eq.s32.totalorder %s28, 3
      %p110 = por %p108, %p109
      %p111 = scmp.ne.s32.totalorder %s100, %s101
      %p112 = scmp.eq.s32.totalorder %s28, 0
      %p113 = por %p111, %p112
      %p114 = scmp.ne.s32.totalorder %s100, %s101
      %p115 = scmp.eq.s32.totalorder %s29, 3
      %p116 = por %p114, %p115
      %p118 = scmp.ne.s32.totalorder %s101, %s117
      %p119 = scmp.eq.s32.totalorder %s29, 0
      %p120 = por %p118, %p119
      %s121 = ssub.s32 %s30, %s42
      %s122 = ssub.s32 %s31, %s38
      %s123 = sor.u32 %s121, %s122
      %p124 = scmp.eq.s32.totalorder %s123, 0
      %s126 = sadd.s32 %s125, 1
      %s127 = scalar_select %p124, %s125, %s126
      %p130 = pneg %p124
      %p131 = scmp.eq.s32.totalorder %s23, 3
      %p132 = por %p130, %p131
      %p133 = scmp.ne.s32.totalorder %s125, %s128
      %p134 = scmp.eq.s32.totalorder %s23, 0
      %p135 = por %p133, %p134
      %p136 = scmp.ne.s32.totalorder %s125, %s128
      %p137 = scmp.eq.s32.totalorder %s28, 3
      %p138 = por %p136, %p137
      %p139 = scmp.ne.s32.totalorder %s128, %s129
      %p140 = scmp.eq.s32.totalorder %s28, 0
      %p141 = por %p139, %p140
      %p142 = scmp.ne.s32.totalorder %s128, %s129
      %p143 = scmp.eq.s32.totalorder %s29, 3
      %p144 = por %p142, %p143
      %p146 = scmp.ne.s32.totalorder %s129, %s145
      %p147 = scmp.eq.s32.totalorder %s29, 0
      %p148 = por %p146, %p147
      %s149 = ssub.s32 %s30, %s42
      %p150 = scmp.eq.s32.totalorder %s149, 0
      %s152 = sadd.s32 %s151, 1
      %s153 = scalar_select %p150, %s151, %s152
      %p156 = pneg %p150
      %p157 = scmp.eq.s32.totalorder %s23, 3
      %p158 = por %p156, %p157
      %p159 = scmp.ne.s32.totalorder %s151, %s154
      %p160 = scmp.eq.s32.totalorder %s23, 0
      %p161 = por %p159, %p160
      %p162 = scmp.ne.s32.totalorder %s151, %s154
      %p163 = scmp.eq.s32.totalorder %s28, 3
      %p164 = por %p162, %p163
      %p165 = scmp.ne.s32.totalorder %s154, %s155
      %p166 = scmp.eq.s32.totalorder %s28, 0
      %p167 = por %p165, %p166
      %p168 = scmp.ne.s32.totalorder %s154, %s155
      %p169 = scmp.eq.s32.totalorder %s29, 3
      %p170 = por %p168, %p169
      %p172 = scmp.ne.s32.totalorder %s155, %s171
      %p173 = scmp.eq.s32.totalorder %s29, 0
      %p174 = por %p172, %p173
      %p175 = scmp.le.s32.totalorder 1, %s23
      %p176 = scmp.lt.s32.totalorder %s23, 5
      %p177 = pnand %p175, %p176
      %p178 = pneg %p177
      // Predicated region
      $region9: #{tpu_custom_call.1} parent=5 // pred_check
        _
      $region10: #{tpu_custom_call.1} parent=5 // pred_check_branch
        %180 = sbr.rel (%p177) target = $region12
      $region11: #{tpu_custom_call.1} parent=5 // pred_region
        %s181 = ssub.s32 %s23, 1
      $region12: #{tpu_custom_call.1} parent=5 // pred_fallthru
        _
      %p182 = scmp.lt.s32.totalorder %s23, 4
      // Predicated region
      $region13: #{tpu_custom_call.1} parent=5 // pred_check
        %p183 = pneg %p182
      $region14: #{tpu_custom_call.1} parent=5 // pred_check_branch
        %185 = sbr.rel (%p183) target = $region16
      $region15: #{tpu_custom_call.1} parent=5 // pred_region
        // Predicated region
        $region17: #{tpu_custom_call.1} parent=15 // pred_check
          %p186 = pneg %p55
        $region18: #{tpu_custom_call.1} parent=15 // pred_check_branch
          %188 = sbr.rel (%p186) target = $region20
        $region19: #{tpu_custom_call.1} parent=15 // pred_region
          %s189 = sand.u32 %s45, 1
          %s190 = scalar_lea.sflag [#allocation4], %s189
          %s191 = sand.u32 %s45, 1
          %s192 = smul.addr %s191, 16
          %s193 = scalar_lea.vmem [#allocation3], %s192
          %s195 = ssub.s32 256, 256
          %196 = vsyncadd %s190, %s195
          %s197 = smul.addr %s30, 2
          %s198 = smul.addr %s197, 128
          %s199 = scalar_lea.hbm %s0, %s198
          %s200 = sshll.u32 %s193, 4
          %s201 = int_to_ptr.vmem [resolvable:$true] %s200
          %206 = dma.hbm_to_vmem [thread:$0]  %s199, 256, %s201, %s190, 128, 128, 8
        $region20: #{tpu_custom_call.1} parent=15 // pred_fallthru
          _
        // Predicated region
        $region21: #{tpu_custom_call.1} parent=15 // pred_check
          %p207 = pneg %p81
        $region22: #{tpu_custom_call.1} parent=15 // pred_check_branch
          %209 = sbr.rel (%p207) target = $region24
        $region23: #{tpu_custom_call.1} parent=15 // pred_region
          %s210 = sand.u32 %s23, 1
          %s211 = scalar_lea.sflag [#allocation7], %s210
          %s212 = sand.u32 %s71, 1
          %s213 = smul.addr %s212, 64
          %s214 = scalar_lea.vmem [#allocation6], %s213
          %s216 = ssub.s32 1024, 1024
          %217 = vsyncadd %s211, %s216
          %s218 = smul.addr %s30, 16
          %s219 = smul.addr %s218, 64
          %s220 = scalar_lea.hbm %s1, %s219
          %s221 = sshll.u32 %s214, 4
          %s222 = int_to_ptr.vmem [resolvable:$true] %s221
          %227 = dma.hbm_to_vmem [thread:$0]  %s220, 1024, %s222, %s211, 64, 64, 4
        $region24: #{tpu_custom_call.1} parent=15 // pred_fallthru
          _
        // Predicated region
        $region25: #{tpu_custom_call.1} parent=15 // pred_check
          %p228 = pneg %p107
        $region26: #{tpu_custom_call.1} parent=15 // pred_check_branch
          %230 = sbr.rel (%p228) target = $region28
        $region27: #{tpu_custom_call.1} parent=15 // pred_region
          %s231 = sand.u32 %s23, 1
          %s232 = scalar_lea.sflag [#allocation7], %s231
          %s233 = sand.u32 %s97, 1
          %s234 = smul.addr %s233, 64
          %s235 = scalar_lea.vmem [#allocation8], %s234
          %s237 = ssub.s32 1024, 1024
          %238 = vsyncadd %s232, %s237
          %s239 = smul.addr %s31, 64
          %s240 = scalar_lea.hbm %s2, %s239
          %s241 = sshll.u32 %s235, 4
          %s242 = int_to_ptr.vmem [resolvable:$true] %s241
          %247 = dma.hbm_to_vmem [thread:$0]  %s240, 1024, %s242, %s232, 128, 64, 4
        $region28: #{tpu_custom_call.1} parent=15 // pred_fallthru
          _
      $region16: #{tpu_custom_call.1} parent=5 // pred_fallthru
        _
      %p248 = scmp.le.s32.totalorder 1, %s23
      %p249 = scmp.lt.s32.totalorder %s23, 5
      %p250 = pnand %p248, %p249
      %p251 = pneg %p250
      // Predicated region
      $region29: #{tpu_custom_call.1} parent=5 // pred_check
        _
      $region30: #{tpu_custom_call.1} parent=5 // pred_check_branch
        %253 = sbr.rel (%p250) target = $region32
      $region31: #{tpu_custom_call.1} parent=5 // pred_region
        %s254 = ssub.s32 %s23, 1
        %s255 = sand.u32 %s48, 1
        %s256 = scalar_lea.sflag [#allocation4], %s255
        %s257 = sand.u32 %s48, 1
        %s258 = smul.addr %s257, 16
        %s259 = scalar_lea.vmem [#allocation3], %s258
        // Predicated region
        $region33: #{tpu_custom_call.1} parent=31 // pred_check
          %p260 = pneg %p61
        $region34: #{tpu_custom_call.1} parent=31 // pred_check_branch
          %262 = sbr.rel (%p260) target = $region36
        $region35: #{tpu_custom_call.1} parent=31 // pred_region
          %263 = dma.done %s256, 256
        $region36: #{tpu_custom_call.1} parent=31 // pred_fallthru
          _
        %s264 = sand.u32 %s28, 1
        %s265 = scalar_lea.sflag [#allocation7], %s264
        %s266 = sand.u32 %s74, 1
        %s267 = smul.addr %s266, 64
        %s268 = scalar_lea.vmem [#allocation6], %s267
        // Predicated region
        $region37: #{tpu_custom_call.1} parent=31 // pred_check
          %p269 = pneg %p87
        $region38: #{tpu_custom_call.1} parent=31 // pred_check_branch
          %271 = sbr.rel (%p269) target = $region40
        $region39: #{tpu_custom_call.1} parent=31 // pred_region
          %272 = dma.done %s265, 1024
        $region40: #{tpu_custom_call.1} parent=31 // pred_fallthru
          _
        %s273 = sand.u32 %s28, 1
        %s274 = scalar_lea.sflag [#allocation7], %s273
        %s275 = sand.u32 %s100, 1
        %s276 = smul.addr %s275, 64
        %s277 = scalar_lea.vmem [#allocation8], %s276
        // Predicated region
        $region41: #{tpu_custom_call.1} parent=31 // pred_check
          %p278 = pneg %p113
        $region42: #{tpu_custom_call.1} parent=31 // pred_check_branch
          %280 = sbr.rel (%p278) target = $region44
        $region43: #{tpu_custom_call.1} parent=31 // pred_region
          %281 = dma.done %s274, 1024
        $region44: #{tpu_custom_call.1} parent=31 // pred_fallthru
          _
        %s282 = sand.u32 %s48, 1
        %s283 = scalar_lea.sflag [#allocation4], %s282
        %s284 = sand.u32 %s48, 1
        %s285 = smul.addr %s284, 16
        %s286 = scalar_lea.vmem [#allocation3], %s285
        %p287 = pneg %p61
        %p288 = pneg %p58
        %s289 = sand.u32 %s28, 1
        %s290 = scalar_lea.sflag [#allocation7], %s289
        %s291 = sand.u32 %s74, 1
        %s292 = smul.addr %s291, 64
        %s293 = scalar_lea.vmem [#allocation6], %s292
        %p294 = pneg %p87
        %p295 = pneg %p84
        %s296 = sand.u32 %s28, 1
        %s297 = scalar_lea.sflag [#allocation7], %s296
        %s298 = sand.u32 %s100, 1
        %s299 = smul.addr %s298, 64
        %s300 = scalar_lea.vmem [#allocation8], %s299
        %p301 = pneg %p113
        %p302 = pneg %p110
        %p303 = pneg %p141
        %p304 = pneg %p138
        %s305 = sand.u32 %s128, 1
        %s306 = scalar_lea.sflag [#allocation5], %s305
        %s307 = sand.u32 %s128, 1
        %s308 = smul.addr %s307, 16
        %s309 = scalar_lea.vmem [#allocation9], %s308
        %p310 = pneg %p167
        %p311 = pneg %p164
        %s312 = sand.u32 %s154, 1
        %s313 = scalar_lea.sflag [#allocation11], %s312
        %s314 = sand.u32 %s154, 1
        %s315 = smul.addr %s314, 16
        %s316 = scalar_lea.vmem [#allocation10], %s315
        %p318 = scmp.eq.s32.totalorder %s33, 0
        // Predicated region
        $region45: #{tpu_custom_call.1} parent=31 // pred_check
          %p319 = pneg %p318
        $region46: #{tpu_custom_call.1} parent=31 // pred_check_branch
          %321 = sbr.rel (%p319) target = $region48
        $region47: #{tpu_custom_call.1} parent=31 // pred_region
          %v322 = vld [vmem:[%s259] sm:$0xff]
          %v323 = vld [vmem:[%s259 + $0x8] sm:$0xff]
          %v324 = vmul.f32 %v322, 0.17677669
          %v325 = vmul.f32 %v323, 0.17677669
          %v326 = vpack.c.bf16 %v325, %v324
          %v327 = vld [vmem:[%s268] sm:$0xf]
          %v328 = vld [vmem:[%s268 + $0x4] sm:$0xf]
          %v329 = vld [vmem:[%s268 + $0x8] sm:$0xf]
          %v330 = vld [vmem:[%s268 + $0xc] sm:$0xf]
          %v331 = vld [vmem:[%s268 + $0x10] sm:$0xf]
          %v332 = vld [vmem:[%s268 + $0x14] sm:$0xf]
          %v333 = vld [vmem:[%s268 + $0x18] sm:$0xf]
          %v334 = vld [vmem:[%s268 + $0x1c] sm:$0xf]
          %v335 = vld [vmem:[%s268 + $0x20] sm:$0xf]
          %v336 = vld [vmem:[%s268 + $0x24] sm:$0xf]
          %v337 = vld [vmem:[%s268 + $0x28] sm:$0xf]
          %v338 = vld [vmem:[%s268 + $0x2c] sm:$0xf]
          %v339 = vld [vmem:[%s268 + $0x30] sm:$0xf]
          %v340 = vld [vmem:[%s268 + $0x34] sm:$0xf]
          %v341 = vld [vmem:[%s268 + $0x38] sm:$0xf]
          %v342 = vld [vmem:[%s268 + $0x3c] sm:$0xf]
          %v359 = vunpack.c.l.b16 %v327
          %v360 = vunpack.c.l.b16 %v328
          %v361 = vunpack.c.l.b16 %v329
          %v362 = vunpack.c.l.b16 %v330
          %v363 = vunpack.c.l.b16 %v331
          %v364 = vunpack.c.l.b16 %v332
          %v365 = vunpack.c.l.b16 %v333
          %v366 = vunpack.c.l.b16 %v334
          %v367 = vunpack.c.l.b16 %v335
          %v368 = vunpack.c.l.b16 %v336
          %v369 = vunpack.c.l.b16 %v337
          %v370 = vunpack.c.l.b16 %v338
          %v371 = vunpack.c.l.b16 %v339
          %v372 = vunpack.c.l.b16 %v340
          %v373 = vunpack.c.l.b16 %v341
          %v374 = vunpack.c.l.b16 %v342
          %v375 = vpack.c.b16 %v360, %v359
          %v376 = vpack.c.b16 %v362, %v361
          %v377 = vpack.c.b16 %v364, %v363
          %v378 = vpack.c.b16 %v366, %v365
          %v379 = vpack.c.b16 %v368, %v367
          %v380 = vpack.c.b16 %v370, %v369
          %v381 = vpack.c.b16 %v372, %v371
          %v382 = vpack.c.b16 %v374, %v373
          %391 = vmatprep.subr.bf16.mxu0 0
          %392 = vmatpush1.bf16.xpose.msra.mxu0 %v375
          %393 = vmatprep.subr.bf16.mxu0 0
          %394 = vmatpush1.bf16.xpose.msra.mxu0 %v376
          %395 = vmatprep.subr.bf16.mxu0 0
          %396 = vmatpush1.bf16.xpose.msra.mxu0 %v377
          %397 = vmatprep.subr.bf16.mxu0 0
          %398 = vmatpush1.bf16.xpose.msra.mxu0 %v378
          %399 = vmatprep.subr.bf16.mxu0 0
          %400 = vmatpush1.bf16.xpose.msra.mxu0 %v379
          %401 = vmatprep.subr.bf16.mxu0 0
          %402 = vmatpush1.bf16.xpose.msra.mxu0 %v380
          %403 = vmatprep.subr.bf16.mxu0 0
          %404 = vmatpush1.bf16.xpose.msra.mxu0 %v381
          %405 = vmatprep.subr.bf16.mxu0 0
          %406 = vmatpush1.bf16.xpose.msra.mxu0 %v382
          %407 = vmatprep.subr.bf16.mxu0 0
          %408 = vmatpush1.bf16.xpose.msra.mxu0 0
          %409 = vmatprep.subr.bf16.mxu0 0
          %410 = vmatpush1.bf16.xpose.msra.mxu0 0
          %411 = vmatprep.subr.bf16.mxu0 0
          %412 = vmatpush1.bf16.xpose.msra.mxu0 0
          %413 = vmatprep.subr.bf16.mxu0 0
          %414 = vmatpush1.bf16.xpose.msra.mxu0 0
          %415 = vmatprep.subr.bf16.mxu0 0
          %416 = vmatpush1.bf16.xpose.msra.mxu0 0
          %417 = vmatprep.subr.bf16.mxu0 0
          %418 = vmatpush1.bf16.xpose.msra.mxu0 0
          %419 = vmatprep.subr.bf16.mxu0 0
          %420 = vmatpush1.bf16.xpose.msra.mxu0 0
          %421 = vmatprep.subr.bf16.mxu0 0
          %422 = vmatpush1.bf16.xpose.msra.mxu0 0
          %423 = vmatprep.mubr.bf16.mxu0 0
          %424 = vmatmul.mubr.bf16.gmra.mrb[0].mxu0 %v326
          %v425 = vpop.f32.mrb[0].mxu0
          %v426 = vadd.f32 0.0, %v425
          %v427 = vpop.f32.mrb[0].mxu0
          %v428 = vpop.f32.mrb[0].mxu0
          %v429 = vadd.f32 0.0, %v428
          %v430 = vpop.f32.mrb[0].mxu0
          %431 = vdwg.mxu0
          %v432 = vlaneseq
          %v433 = vand.u32 %v432, 127
          %vm434 = vcmp.lt.s32.totalorder %v433, 40
          %v435 = vsel %vm434, %v426, -1e+30
          %v436 = vsel %vm434, %v429, -1e+30
          %437 = vmax.xlane.f32.xlu0 %v435
          %v438 = vpop.xlane.xlu0 %437
          %439 = vmax.xlane.f32.xlu0 %v436
          %v440 = vpop.xlane.xlu0 %439
          %v441 = vsub.f32 %v435, %v438
          %v442 = vsub.f32 %v436, %v440
          %v443 = vmul.f32 %v441, 1.442695
          %v444 = vpow.pop %v443
          %v445 = vmul.f32 %v442, 1.442695
          %v446 = vpow.pop %v445
          %447 = vadd.xlane.f32.xlu0 %v444
          %v448 = vpop.xlane.xlu0 %447
          %449 = vadd.xlane.f32.xlu0 %v446
          %v450 = vpop.xlane.xlu0 %449
          %v451 = vrcp.pop %v448
          %v452 = vrcp.pop %v450
          %v453 = vmul.f32 %v444, %v451
          %v454 = vmul.f32 %v446, %v452
          %455 = vst [vmem:[%s316] sm:$0xff] %v453
          %456 = vst [vmem:[%s316 + $0x8] sm:$0xff] %v454
          %v457 = vpack.c.bf16 %v454, %v453
          %458 = vmatprep.subr.bf16.mxu0 0
          %459 = vmatpush1.bf16.msra.mxu0 %v375
          %460 = vmatprep.subr.bf16.mxu0 0
          %461 = vmatpush1.bf16.msra.mxu0 %v376
          %462 = vmatprep.subr.bf16.mxu0 0
          %463 = vmatpush1.bf16.msra.mxu0 %v377
          %464 = vmatprep.subr.bf16.mxu0 0
          %465 = vmatpush1.bf16.msra.mxu0 %v378
          %466 = vmatprep.subr.bf16.mxu0 0
          %467 = vmatpush1.bf16.msra.mxu0 %v379
          %468 = vmatprep.subr.bf16.mxu0 0
          %469 = vmatpush1.bf16.msra.mxu0 %v380
          %470 = vmatprep.subr.bf16.mxu0 0
          %471 = vmatpush1.bf16.msra.mxu0 %v381
          %472 = vmatprep.subr.bf16.mxu0 0
          %473 = vmatpush1.bf16.msra.mxu0 %v382
          %474 = vmatprep.subr.bf16.mxu0 0
          %475 = vmatpush1.bf16.msra.mxu0 0
          %476 = vmatprep.subr.bf16.mxu0 0
          %477 = vmatpush1.bf16.msra.mxu0 0
          %478 = vmatprep.subr.bf16.mxu0 0
          %479 = vmatpush1.bf16.msra.mxu0 0
          %480 = vmatprep.subr.bf16.mxu0 0
          %481 = vmatpush1.bf16.msra.mxu0 0
          %482 = vmatprep.subr.bf16.mxu0 0
          %483 = vmatpush1.bf16.msra.mxu0 0
          %484 = vmatprep.subr.bf16.mxu0 0
          %485 = vmatpush1.bf16.msra.mxu0 0
          %486 = vmatprep.subr.bf16.mxu0 0
          %487 = vmatpush1.bf16.msra.mxu0 0
          %488 = vmatprep.subr.bf16.mxu0 0
          %489 = vmatpush1.bf16.msra.mxu0 0
          %490 = vmatprep.mubr.bf16.mxu0 0
          %491 = vmatmul.mubr.bf16.gmra.mrb[0].mxu0 %v457
          %v492 = vpop.f32.mrb[0].mxu0
          %v493 = vadd.f32 %v322, %v492
          %v494 = vpop.f32.mrb[0].mxu0
          %v495 = vpop.f32.mrb[0].mxu0
          %v496 = vadd.f32 %v323, %v495
          %v497 = vpop.f32.mrb[0].mxu0
          %498 = vdwg.mxu0
          %v499 = vpack.c.bf16 %v496, %v493
          %500 = vst [vmem:[#allocation2] sm:$0xff] %v499
        $region48: #{tpu_custom_call.1} parent=31 // pred_fallthru
          _
        %v501 = vld [vmem:[#allocation2] sm:$0xff]
        %v502 = vld [vmem:[%s277] sm:$0xf]
        %v503 = vld [vmem:[%s277 + $0x4] sm:$0xf]
        %v504 = vld [vmem:[%s277 + $0x8] sm:$0xf]
        %v505 = vld [vmem:[%s277 + $0xc] sm:$0xf]
        %v506 = vld [vmem:[%s277 + $0x10] sm:$0xf]
        %v507 = vld [vmem:[%s277 + $0x14] sm:$0xf]
        %v508 = vld [vmem:[%s277 + $0x18] sm:$0xf]
        %v509 = vld [vmem:[%s277 + $0x1c] sm:$0xf]
        %v510 = vld [vmem:[%s277 + $0x20] sm:$0xf]
        %v511 = vld [vmem:[%s277 + $0x24] sm:$0xf]
        %v512 = vld [vmem:[%s277 + $0x28] sm:$0xf]
        %v513 = vld [vmem:[%s277 + $0x2c] sm:$0xf]
        %v514 = vld [vmem:[%s277 + $0x30] sm:$0xf]
        %v515 = vld [vmem:[%s277 + $0x34] sm:$0xf]
        %v516 = vld [vmem:[%s277 + $0x38] sm:$0xf]
        %v517 = vld [vmem:[%s277 + $0x3c] sm:$0xf]
        %v534 = vunpack.c.l.b16 %v502
        %v535 = vunpack.c.l.b16 %v503
        %v536 = vunpack.c.l.b16 %v504
        %v537 = vunpack.c.l.b16 %v505
        %v538 = vunpack.c.l.b16 %v506
        %v539 = vunpack.c.l.b16 %v507
        %v540 = vunpack.c.l.b16 %v508
        %v541 = vunpack.c.l.b16 %v509
        %v542 = vunpack.c.l.b16 %v510
        %v543 = vunpack.c.l.b16 %v511
        %v544 = vunpack.c.l.b16 %v512
        %v545 = vunpack.c.l.b16 %v513
        %v546 = vunpack.c.l.b16 %v514
        %v547 = vunpack.c.l.b16 %v515
        %v548 = vunpack.c.l.b16 %v516
        %v549 = vunpack.c.l.b16 %v517
        %v550 = vpack.c.b16 %v535, %v534
        %v551 = vpack.c.b16 %v537, %v536
        %v552 = vpack.c.b16 %v539, %v538
        %v553 = vpack.c.b16 %v541, %v540
        %v554 = vpack.c.b16 %v543, %v542
        %v555 = vpack.c.b16 %v545, %v544
        %v556 = vpack.c.b16 %v547, %v546
        %v557 = vpack.c.b16 %v549, %v548
        %566 = vmatprep.subr.bf16.mxu0 0
        %567 = vmatpush1.bf16.msra.mxu0 %v550
        %568 = vmatprep.subr.bf16.mxu0 0
        %569 = vmatpush1.bf16.msra.mxu0 %v551
        %570 = vmatprep.subr.bf16.mxu0 0
        %571 = vmatpush1.bf16.msra.mxu0 %v552
        %572 = vmatprep.subr.bf16.mxu0 0
        %573 = vmatpush1.bf16.msra.mxu0 %v553
        %574 = vmatprep.subr.bf16.mxu0 0
        %575 = vmatpush1.bf16.msra.mxu0 %v554
        %576 = vmatprep.subr.bf16.mxu0 0
        %577 = vmatpush1.bf16.msra.mxu0 %v555
        %578 = vmatprep.subr.bf16.mxu0 0
        %579 = vmatpush1.bf16.msra.mxu0 %v556
        %580 = vmatprep.subr.bf16.mxu0 0
        %581 = vmatpush1.bf16.msra.mxu0 %v557
        %582 = vmatprep.subr.bf16.mxu0 0
        %583 = vmatpush1.bf16.msra.mxu0 0
        %584 = vmatprep.subr.bf16.mxu0 0
        %585 = vmatpush1.bf16.msra.mxu0 0
        %586 = vmatprep.subr.bf16.mxu0 0
        %587 = vmatpush1.bf16.msra.mxu0 0
        %588 = vmatprep.subr.bf16.mxu0 0
        %589 = vmatpush1.bf16.msra.mxu0 0
        %590 = vmatprep.subr.bf16.mxu0 0
        %591 = vmatpush1.bf16.msra.mxu0 0
        %592 = vmatprep.subr.bf16.mxu0 0
        %593 = vmatpush1.bf16.msra.mxu0 0
        %594 = vmatprep.subr.bf16.mxu0 0
        %595 = vmatpush1.bf16.msra.mxu0 0
        %596 = vmatprep.subr.bf16.mxu0 0
        %597 = vmatpush1.bf16.msra.mxu0 0
        %598 = vmatprep.mubr.bf16.mxu0 0
        %599 = vmatmul.mubr.bf16.gmra.mrb[0].mxu0 %v501
        %v600 = vpop.f32.mrb[0].mxu0
        %v601 = vadd.f32 0.0, %v600
        %v602 = vpop.f32.mrb[0].mxu0
        %v603 = vpop.f32.mrb[0].mxu0
        %v604 = vadd.f32 0.0, %v603
        %v605 = vpop.f32.mrb[0].mxu0
        %606 = vdwg.mxu0
        %607 = vst [vmem:[%s309] sm:$0xff] %v601
        %608 = vst [vmem:[%s309 + $0x8] sm:$0xff] %v604
        %s609 = sand.u32 %s128, 1
        %s610 = scalar_lea.sflag [#allocation5], %s609
        %s611 = sand.u32 %s128, 1
        %s612 = smul.addr %s611, 16
        %s613 = scalar_lea.vmem [#allocation9], %s612
        %s614 = sand.u32 %s154, 1
        %s615 = scalar_lea.sflag [#allocation11], %s614
        %s616 = sand.u32 %s154, 1
        %s617 = smul.addr %s616, 16
        %s618 = scalar_lea.vmem [#allocation10], %s617
        // Predicated region
        $region49: #{tpu_custom_call.1} parent=31 // pred_check
          %p619 = pneg %p138
        $region50: #{tpu_custom_call.1} parent=31 // pred_check_branch
          %621 = sbr.rel (%p619) target = $region52
        $region51: #{tpu_custom_call.1} parent=31 // pred_region
          %s623 = ssub.s32 256, 256
          %624 = vsyncadd %s610, %s623
          %s625 = smul.addr %s32, 4
          %s626 = sadd.s32 %s33, %s625
          %s627 = smul.addr %s626, 128
          %s628 = scalar_lea.hbm %s3, %s627
          %s629 = sshll.u32 %s613, 4
          %s630 = int_to_ptr.vmem [resolvable:$true] %s629
          %635 = dma.vmem_to_hbm [thread:$0]  %s630, 256, %s628, %s610, 128, 256, 8
        $region52: #{tpu_custom_call.1} parent=31 // pred_fallthru
          _
        // Predicated region
        $region53: #{tpu_custom_call.1} parent=31 // pred_check
          %p636 = pneg %p164
        $region54: #{tpu_custom_call.1} parent=31 // pred_check_branch
          %638 = sbr.rel (%p636) target = $region56
        $region55: #{tpu_custom_call.1} parent=31 // pred_region
          %s640 = ssub.s32 256, 256
          %641 = vsyncadd %s615, %s640
          %s642 = smul.addr %s32, 2
          %s643 = smul.addr %s642, 128
          %s644 = scalar_lea.hbm %s4, %s643
          %s645 = sshll.u32 %s618, 4
          %s646 = int_to_ptr.vmem [resolvable:$true] %s645
          %651 = dma.vmem_to_hbm [thread:$0]  %s646, 256, %s644, %s615, 128, 128, 8
        $region56: #{tpu_custom_call.1} parent=31 // pred_fallthru
          _
      $region32: #{tpu_custom_call.1} parent=5 // pred_fallthru
        _
      %p652 = scmp.le.s32.totalorder 2, %s23
      // Predicated region
      $region57: #{tpu_custom_call.1} parent=5 // pred_check
        %p653 = pneg %p652
      $region58: #{tpu_custom_call.1} parent=5 // pred_check_branch
        %655 = sbr.rel (%p653) target = $region60
      $region59: #{tpu_custom_call.1} parent=5 // pred_region
        %s656 = ssub.s32 %s23, 2
        // Predicated region
        $region61: #{tpu_custom_call.1} parent=59 // pred_check
          %p657 = pneg %p144
        $region62: #{tpu_custom_call.1} parent=59 // pred_check_branch
          %659 = sbr.rel (%p657) target = $region64
        $region63: #{tpu_custom_call.1} parent=59 // pred_region
          %s660 = sand.u32 %s129, 1
          %s661 = scalar_lea.sflag [#allocation5], %s660
          %s662 = sand.u32 %s129, 1
          %s663 = smul.addr %s662, 16
          %s664 = scalar_lea.vmem [#allocation9], %s663
          %665 = dma.done %s661, 256
        $region64: #{tpu_custom_call.1} parent=59 // pred_fallthru
          _
        // Predicated region
        $region65: #{tpu_custom_call.1} parent=59 // pred_check
          %p666 = pneg %p170
        $region66: #{tpu_custom_call.1} parent=59 // pred_check_branch
          %668 = sbr.rel (%p666) target = $region68
        $region67: #{tpu_custom_call.1} parent=59 // pred_region
          %s669 = sand.u32 %s155, 1
          %s670 = scalar_lea.sflag [#allocation11], %s669
          %s671 = sand.u32 %s155, 1
          %s672 = smul.addr %s671, 16
          %s673 = scalar_lea.vmem [#allocation10], %s672
          %674 = dma.done %s670, 256
        $region68: #{tpu_custom_call.1} parent=59 // pred_fallthru
          _
      $region60: #{tpu_custom_call.1} parent=5 // pred_fallthru
        _
    $region6: #{tpu_custom_call.1} parent=1 // loop_footer
      %s27 = sadd.s32 1, %s23
    $region7: #{tpu_custom_call.1} parent=1 // loop_footer_branch
      %22 = sbr.rel target = $region3
    $region8: #{tpu_custom_call.1} parent=1 // loop_exit
      _
    %675 = vsyncpa [#allocation4], 1
    %s676 = scalar_lea.sflag [#allocation4], 1
    %677 = vsyncpa %s676, 1
    %678 = vsyncpa [#allocation7], 1
    %s679 = scalar_lea.sflag [#allocation7], 1
    %680 = vsyncpa %s679, 1
    %681 = vsyncpa [#allocation5], 1
    %s682 = scalar_lea.sflag [#allocation5], 1
    %683 = vsyncpa %s682, 1
    %684 = vsyncpa [#allocation11], 1
    %s685 = scalar_lea.sflag [#allocation11], 1
    %686 = vsyncpa %s685, 1

</llo_original>
